<compile_context>
chip_gen: v6e
topology: v6e:2x2x1
jax: 0.10.0
libtpu: 0.0.40
codegen_flags: <defaults>
</compile_context>

<pallas_src>
import jax
import jax.numpy as jnp
from jax.experimental import pallas as pl
from jax.experimental.pallas import tpu as pltpu


def _cdiv(a, b):
    return (a + b - 1) // b


def _round_up(x, m):
    return ((x + m - 1) // m) * m


def _make_kernel(apply_sigmoid, valid_e):
    """valid_e: true number of embedding columns (E); tail columns are masked."""

    def kernel(x_ref, w_ref, b_ref, o_ref, acc_ref):
        # x_ref: (tb, te) native dtype     w_ref: (1, te) f32, lane-dense
        # b_ref: (1, 1) f32 in SMEM        o_ref: (tb, 1) f32
        # acc_ref: (tb, 128) f32 VMEM scratch, persists across the E-reduction axis.
        tb, te = x_ref.shape
        n_groups = te // 128
        needs_mask = (valid_e % te) != 0   # static: only when E is not a multiple of te
        k = pl.program_id(1)

        @pl.when(k == 0)
        def _init():
            acc_ref[...] = jnp.zeros_like(acc_ref)

        if needs_mask:
            # Global column index of lane l in chunk j is k*te + j*128 + l.
            col_base = k * te + jax.lax.broadcasted_iota(jnp.int32, (1, 128), 1)

        # 128-column chunked multiply-accumulate: each chunk is an aligned vld,
        # f32 cast, VPU mul, VPU add -- no full-block f32 intermediate and no
        # per-step XLU reduce.  A few independent running partials keep the add
        # chain short without blowing vreg pressure for large tb.
        vregs_per_partial = max(tb // 8, 1)
        n_par = max(1, min(8, 32 // vregs_per_partial, n_groups))
        partials = [None] * n_par
        for j in range(n_groups):
            sl = slice(j * 128, (j + 1) * 128)
            pj = x_ref[:, sl].astype(jnp.float32) * w_ref[:, sl]
            if needs_mask:
                # Mask the product (not just x): garbage tail bits can be NaN/Inf.
                pj = jnp.where(col_base + (j * 128) < valid_e, pj, 0.0)
            s = j % n_par
            partials[s] = pj if partials[s] is None else partials[s] + pj

        total = partials[0]
        for p in partials[1:]:
            if p is not None:
                total = total + p
        acc_ref[...] += total

        @pl.when(k == pl.num_programs(1) - 1)
        def _finalize():
            # Single cross-lane (XLU) reduce per batch tile, then bias (+ sigmoid).
            y = jnp.sum(acc_ref[...], axis=-1, keepdims=True) + b_ref[0, 0]
            if apply_sigmoid:
                y = 1.0 / (1.0 + jnp.exp(-y))
            o_ref[...] = y

    return kernel


def _loglinear_call(x, weight, bias, *, apply_sigmoid=False,
                    block_b=256, target_block_bytes=12 * 1024 * 1024):
    """x: (B, *dims) float/int dtype; weight: (1, E); bias: (1,). Returns (B, 1) f32."""
    B = x.shape[0]
    flat_x = jnp.reshape(x, (B, -1))            # flatten(x, 1); f32 cast happens in-kernel
    E = flat_x.shape[1]
    assert weight.shape == (1, E), (weight.shape, E)

    itemsize = flat_x.dtype.itemsize

    # ---- batch tiling: balanced, 8-aligned; keep nb >= 2 when possible so both
    #      v7x TensorCores get work (no-op on v5e/v6e, harmless for small B).
    nb_min = 2 if B >= 16 else 1
    nb = max(_cdiv(B, block_b), nb_min)
    tb = _round_up(_cdiv(B, nb), 8)
    nb = _cdiv(B, tb)

    # ---- reduction (E) tiling: cap the x block by a per-step byte budget (amortizes
    #      the ~0.35us grid-step overhead), then balance so the padded tail is <128
    #      columns.  Extra cap of 64K columns bounds the in-kernel chunk unroll.
    te_cap = (target_block_bytes // max(tb * itemsize, 1)) // 128 * 128
    te_cap = max(128, min(te_cap, 64 * 1024))
    nk = max(1, _cdiv(E, te_cap))
    te = _round_up(_cdiv(E, nk), 128)
    nk = _cdiv(E, te)
    e_pad = nk * te

    # Only the tiny weight row gets padded (zeros in the tail); x is streamed as-is.
    w_row = weight.astype(jnp.float32)
    if e_pad != E:
        w_row = jnp.pad(w_row, ((0, 0), (0, e_pad - E)))
    b_smem = jnp.reshape(bias, (1, 1)).astype(jnp.float32)

    # ---- explicit VMEM budget: double-buffered x/w/out blocks + accumulator + slack.
    x_buf = tb * te * itemsize
    w_buf = 8 * te * 4            # (1, te) block is sublane-padded to 8
    out_buf = tb * 128 * 4        # (tb, 1) block is lane-padded to 128
    acc_buf = tb * 128 * 4
    vmem_limit = int(2 * (x_buf + w_buf + out_buf) + acc_buf + (4 << 20))
    vmem_limit = max(vmem_limit, 16 << 20)

    cost = pl.CostEstimate(
        flops=2 * B * E,
        transcendentals=B if apply_sigmoid else 0,
        bytes_accessed=B * E * itemsize + e_pad * 4 + B * 4 + 4,
    )

    out = pl.pallas_call(
        _make_kernel(apply_sigmoid, E),
        out_shape=jax.ShapeDtypeStruct((B, 1), jnp.float32),
        grid=(nb, nk),
        in_specs=[
            pl.BlockSpec((tb, te), lambda i, k: (i, k)),         # x tile (native dtype)
            pl.BlockSpec((1, te), lambda i, k: (0, k)),          # weight tile (lane-dense)
            pl.BlockSpec(memory_space=pltpu.MemorySpace.SMEM),   # bias scalar
        ],
        out_specs=pl.BlockSpec((tb, 1), lambda i, k: (i, 0)),    # resident across k
        scratch_shapes=[pltpu.VMEM((tb, 128), jnp.float32)],     # lane-dense accumulator
        compiler_params=pltpu.CompilerParams(
            dimension_semantics=("parallel", "arbitrary"),
            vmem_limit_bytes=vmem_limit,
        ),
        cost_estimate=cost,
    )(flat_x, w_row, b_smem)

    return out


def loglinear_forward(x, weight, bias):
    """Matches torch: Linear(E, 1) applied to flatten(x, 1).float()."""
    return _loglinear_call(x, weight, bias, apply_sigmoid=False)


def loglinear_predict(x, weight, bias):
    """Matches torch.sigmoid(forward(x)); sigmoid fused into the finalize step."""
    return _loglinear_call(x, weight, bias, apply_sigmoid=True)


if __name__ == "__main__":
    key = jax.random.PRNGKey(0)

    # Case 1: embedding_dim = (32,), batch = 8 (already-flat input).
    E, B = 32, 8
    kx, kw, kb, krest = jax.random.split(key, 4)
    bound = 1.0 / (E ** 0.5)
    weight = jax.random.uniform(kw, (1, E), jnp.float32, -bound, bound)
    bias = jax.random.uniform(kb, (1,), jnp.float32, -bound, bound)
    x = jax.random.normal(kx, (B, E), jnp.float32)

    y = jax.block_until_ready(loglinear_forward(x, weight, bias))
    ref = jnp.reshape(x, (B, -1)).astype(jnp.float32) @ weight.T + bias
    assert y.shape == (B, 1)
    assert jnp.allclose(y, ref, atol=1e-5, rtol=1e-5)

    p = jax.block_until_ready(loglinear_predict(x, weight, bias))
    assert p.shape == (B, 1)
    assert jnp.allclose(p, jax.nn.sigmoid(ref), atol=1e-5, rtol=1e-5)

    # Case 2: non-flat input with B/E not aligned to (8, 128) — exercises the
    # in-kernel ragged-edge handling without any wrapper-side padding of x.
    B2, C, T = 5, 3, 7                       # E2 = 21
    E2 = C * T
    k1, k2, k3, k4 = jax.random.split(krest, 4)
    bound2 = 1.0 / (E2 ** 0.5)
    w2 = jax.random.uniform(k1, (1, E2), jnp.float32, -bound2, bound2)
    b2 = jax.random.uniform(k2, (1,), jnp.float32, -bound2, bound2)
    x2 = jax.random.normal(k3, (B2, C, T), jnp.float32)

    y2 = jax.block_until_ready(loglinear_forward(x2, w2, b2))
    ref2 = jnp.reshape(x2, (B2, -1)) @ w2.T + b2
    assert y2.shape == (B2, 1)
    assert jnp.allclose(y2, ref2, atol=1e-5, rtol=1e-5)

    # Case 3: multi-block reduction (nk > 1) with a masked E tail and 2 batch blocks
    # (small target_block_bytes forces te = 128 so the masking path is exercised).
    B3, E3 = 20, 300
    k5, k6, k7 = jax.random.split(k4, 3)
    bound3 = 1.0 / (E3 ** 0.5)
    w3 = jax.random.uniform(k5, (1, E3), jnp.float32, -bound3, bound3)
    b3 = jax.random.uniform(k6, (1,), jnp.float32, -bound3, bound3)
    x3 = jax.random.normal(k7, (B3, E3), jnp.float32)

    y3 = jax.block_until_ready(
        _loglinear_call(x3, w3, b3, apply_sigmoid=False, target_block_bytes=8 * 1024))
    ref3 = x3 @ w3.T + b3
    assert y3.shape == (B3, 1)
    assert jnp.allclose(y3, ref3, atol=1e-4, rtol=1e-4)

    print("KERNEL_OK")
</pallas_src>

<mosaic_0001>
module attributes {stable_mosaic.version = 11 : i64} {
  func.func @kernel(%arg0: i32, %arg1: i32, %arg2: memref<8x128xf32, #tpu.memory_space<vmem>>, %arg3: memref<1x128xf32, #tpu.memory_space<vmem>>, %arg4: memref<1x1xf32, #tpu.memory_space<smem>>, %arg5: memref<8x1xf32, #tpu.memory_space<vmem>>, %arg6: memref<8x128xf32, #tpu.memory_space<vmem>>) attributes {dimension_semantics = [#tpu.dimension_semantics<parallel>, #tpu.dimension_semantics<arbitrary>], iteration_bounds = array<i64: 1, 1>, scalar_prefetch = 0 : i64, scratch_operands = 1 : i64, tpu.core_type = #tpu.core_type<tc>, window_params = [{transform_indices = @transform_0, window_bounds = array<i64: 8, 128>}, {transform_indices = @transform_1, window_bounds = array<i64: 1, 128>}, {transform_indices = @transform_2, window_bounds = array<i64: 1, 1>}, {transform_indices = @transform_3, window_bounds = array<i64: 8, 1>}]} {
    %c0_i32 = arith.constant 0 : i32
    %0 = arith.cmpi eq, %arg1, %c0_i32 : i32
    %1 = arith.extui %0 : i1 to i32
    %c0_i32_0 = arith.constant 0 : i32
    %2 = arith.cmpi ne, %1, %c0_i32_0 : i32
    scf.if %2 {
      %cst_11 = arith.constant 0.000000e+00 : f32
      %25 = vector.broadcast %cst_11 : f32 to vector<8x128xf32>
      %c0_12 = arith.constant 0 : index
      %c0_13 = arith.constant 0 : index
      %26 = vector.load %arg6[%c0_12, %c0_13] : memref<8x128xf32, #tpu.memory_space<vmem>>, vector<8x128xf32>
      tpu.vector_store %arg6[%c0_12, %c0_13], %25 {strides = array<i32>} : memref<8x128xf32, #tpu.memory_space<vmem>>, vector<8x128xf32>,
    } else {
    }
    %c128_i32 = arith.constant 128 : i32
    %3 = arith.muli %arg1, %c128_i32 : i32
    %4 = tpu.iota {dimensions = array<i32: 1>} : vector<1x128xi32>
    %5 = vector.broadcast %3 : i32 to vector<1x128xi32>
    %6 = arith.addi %5, %4 : vector<1x128xi32>
    %c0 = arith.constant 0 : index
    %c0_1 = arith.constant 0 : index
    %7 = vector.load %arg2[%c0, %c0_1] : memref<8x128xf32, #tpu.memory_space<vmem>>, vector<8x128xf32>
    %c0_2 = arith.constant 0 : index
    %c0_3 = arith.constant 0 : index
    %8 = vector.load %arg3[%c0_2, %c0_3] : memref<1x128xf32, #tpu.memory_space<vmem>>, vector<1x128xf32>
    %9 = vector.broadcast %8 : vector<1x128xf32> to vector<8x128xf32>
    %10 = arith.mulf %7, %9 : vector<8x128xf32>
    %c0_i32_4 = arith.constant 0 : i32
    %11 = vector.broadcast %c0_i32_4 : i32 to vector<1x128xi32>
    %12 = arith.addi %6, %11 : vector<1x128xi32>
    %c32_i32 = arith.constant 32 : i32
    %13 = vector.broadcast %c32_i32 : i32 to vector<1x128xi32>
    %14 = arith.cmpi slt, %12, %13 : vector<1x128xi32>
    %cst = arith.constant 0.000000e+00 : f32
    %15 = vector.shape_cast %14 : vector<1x128xi1> to vector<1x128xi1>
    %16 = vector.broadcast %15 : vector<1x128xi1> to vector<8x128xi1>
    %17 = vector.broadcast %cst : f32 to vector<8x128xf32>
    %18 = arith.select %16, %10, %17 : vector<8x128xi1>, vector<8x128xf32>
    %c0_5 = arith.constant 0 : index
    %c0_6 = arith.constant 0 : index
    %19 = vector.load %arg6[%c0_5, %c0_6] : memref<8x128xf32, #tpu.memory_space<vmem>>, vector<8x128xf32>
    %20 = arith.addf %19, %18 : vector<8x128xf32>
    %c0_7 = arith.constant 0 : index
    %c0_8 = arith.constant 0 : index
    %21 = vector.load %arg6[%c0_7, %c0_8] : memref<8x128xf32, #tpu.memory_space<vmem>>, vector<8x128xf32>
    tpu.vector_store %arg6[%c0_7, %c0_8], %20 {strides = array<i32>} : memref<8x128xf32, #tpu.memory_space<vmem>>, vector<8x128xf32>,
    %c0_i32_9 = arith.constant 0 : i32
    %22 = arith.cmpi eq, %arg1, %c0_i32_9 : i32
    %23 = arith.extui %22 : i1 to i32
    %c0_i32_10 = arith.constant 0 : i32
    %24 = arith.cmpi ne, %23, %c0_i32_10 : i32
    scf.if %24 {
      %c0_11 = arith.constant 0 : index
      %c0_12 = arith.constant 0 : index
      %25 = vector.load %arg6[%c0_11, %c0_12] : memref<8x128xf32, #tpu.memory_space<vmem>>, vector<8x128xf32>
      %cst_13 = arith.constant dense<0.000000e+00> : vector<8xf32>
      %26 = vector.multi_reduction <add>, %25, %cst_13 [1] : vector<8x128xf32> to vector<8xf32>
      %27 = vector.shape_cast %26 : vector<8xf32> to vector<8x1xf32>
      %c0_14 = arith.constant 0 : index
      %c0_15 = arith.constant 0 : index
      %28 = memref.load %arg4[%c0_14, %c0_15] : memref<1x1xf32, #tpu.memory_space<smem>>
      %29 = vector.broadcast %28 : f32 to vector<8x1xf32>
      %30 = arith.addf %27, %29 : vector<8x1xf32>
      %c0_16 = arith.constant 0 : index
      %c0_17 = arith.constant 0 : index
      %31 = vector.load %arg5[%c0_16, %c0_17] : memref<8x1xf32, #tpu.memory_space<vmem>>, vector<8x1xf32>
      tpu.vector_store %arg5[%c0_16, %c0_17], %30 {strides = array<i32>} : memref<8x1xf32, #tpu.memory_space<vmem>>, vector<8x1xf32>,
    } else {
    }
    return
  }
  func.func @transform_0(%arg0: i32, %arg1: i32) -> (i32, i32) {
    %c0_i32 = arith.constant 0 : i32
    return %arg0, %arg1 : i32, i32
  }
  func.func @transform_1(%arg0: i32, %arg1: i32) -> (i32, i32) {
    %c0_i32 = arith.constant 0 : i32
    %c0_i32_0 = arith.constant 0 : i32
    return %c0_i32, %arg1 : i32, i32
  }
  func.func @transform_2(%arg0: i32, %arg1: i32) -> (i32, i32) {
    %c0_i32 = arith.constant 0 : i32
    %c0_i32_0 = arith.constant 0 : i32
    %c0_i32_1 = arith.constant 0 : i32
    return %c0_i32, %c0_i32_0 : i32, i32
  }
  func.func @transform_3(%arg0: i32, %arg1: i32) -> (i32, i32) {
    %c0_i32 = arith.constant 0 : i32
    %c0_i32_0 = arith.constant 0 : i32
    return %arg0, %c0_i32 : i32, i32
  }
}

</mosaic_0001>

<llo_original>
// kernel: tpu_custom_call.1
$region0: #{tpu_custom_call.1}
  #allocation0 [shape = 'u32[]', space=smem, size = 0x4, offset = 0x4, fixed_abs, tag = 'smem constant byte address 0x4 - core index']
  #allocation1 [shape = 'u32[144,128]{1,0:T(1,128)}', space=vmem, size = 0x12000, scoped, tag = 'internal scratch']
  #allocation2 [shape = 'f32[8,128]{1,0:T(8,128)}', space=vmem, size = 0x1000, scoped, tag = 'scratch operand']
  #allocation3 [shape = 'f32[1,1]{1,0:T(1,128)S(6)}', space=smem, size = 0x200, scoped, tag = 'scoped memory for tpu_custom_call.1']
  %s0 = inlined_call_operand.hbm [shape: f32[8,32], index: 0, kind: input, shape index: {}]
  %s1 = inlined_call_operand.vmem [shape: f32[1,128], index: 1, kind: input, shape index: {}]
  %s2 = inlined_call_operand.<no memory space> [shape: f32[1,1], index: 2, kind: input, shape index: {}]
  %s3 = inlined_call_operand.vmem [shape: f32[8,1], index: 3, kind: output, shape index: {}]
  %s4 = sld [smem:[#allocation0]]
  $region34: #{tpu_custom_call.1} parent=0
    _
  %s6 = ssub.s32 1, %s4
  %s7 = scalar_select 0, %s6, %s4
  %8 = sst [smem:[#allocation3]] %s2
  $region1: #{tpu_custom_call.1} parent=0
    #allocation4 [shape = 'u8[4096]{0}', space=vmem, size = 0x1000, scoped, tag = 'input window, operand 0, single buffered']
    #allocation5 [shape = 's32[1]{0}', space=sflag, size = 0x4, scoped, tag = 'scoped memory for tpu_custom_call.1']
    %9 = vsyncpa [#allocation5], 0
    // Predicated region
    $region2: #{tpu_custom_call.1} parent=1 // pred_check
      _
    $region3: #{tpu_custom_call.1} parent=1 // pred_check_branch
      %11 = sbr.rel (0) target = $region5
    $region4: #{tpu_custom_call.1} parent=1 // pred_region
      %s13 = ssub.s32 128, 128
      %14 = vsyncadd [#allocation5], %s13
      %s16 = sshll.u32 [#allocation4], 4
      %s17 = int_to_ptr.vmem [resolvable:$true] %s16
      %19 = dma.hbm_to_vmem [thread:$0]  %s0, 128, %s17, [#allocation5]
    $region5: #{tpu_custom_call.1} parent=1 // pred_fallthru
      _
    // Predicated region
    $region6: #{tpu_custom_call.1} parent=1 // pred_check
      _
    $region7: #{tpu_custom_call.1} parent=1 // pred_check_branch
      %21 = sbr.rel (0) target = $region9
    $region8: #{tpu_custom_call.1} parent=1 // pred_region
      _
    $region9: #{tpu_custom_call.1} parent=1 // pred_fallthru
      _
    // Predicated region
    $region10: #{tpu_custom_call.1} parent=1 // pred_check
      _
    $region11: #{tpu_custom_call.1} parent=1 // pred_check_branch
      %23 = sbr.rel (0) target = $region13
    $region12: #{tpu_custom_call.1} parent=1 // pred_region
      _
    $region13: #{tpu_custom_call.1} parent=1 // pred_fallthru
      _
    // Predicated region
    $region14: #{tpu_custom_call.1} parent=1 // pred_check
      _
    $region15: #{tpu_custom_call.1} parent=1 // pred_check_branch
      %25 = sbr.rel (0) target = $region17
    $region16: #{tpu_custom_call.1} parent=1 // pred_region
      %26 = dma.done [#allocation5], 128
    $region17: #{tpu_custom_call.1} parent=1 // pred_fallthru
      _
    %p27 = scmp.eq.s32.totalorder 0, 0
    // Predicated region
    $region18: #{tpu_custom_call.1} parent=1 // pred_check
      %p28 = pneg %p27
    $region19: #{tpu_custom_call.1} parent=1 // pred_check_branch
      %30 = sbr.rel (%p28) target = $region21
    $region20: #{tpu_custom_call.1} parent=1 // pred_region
      %31 = vst [vmem:[#allocation2] sm:$0xff] 0.0
    $region21: #{tpu_custom_call.1} parent=1 // pred_fallthru
      _
    %s32 = smul.u32 0, 128
    %v33 = vlaneseq
    %v34 = vand.u32 %v33, 127
    %v35 = vstv %s32
    %v36 = vadd.s32 %v35, %v34
    %v37 = vld [vmem:[#allocation4] sm:$0xff]
    %v38 = vld [vmem:[%s1] sm:$0x1]
    %v40 = vlaneseq
    %v41 = vshrl.u32 %v40, 7
    %v42 = vsub.s32 0, %v41
    %v43 = vrot.slane %v38, %v42
    %v45 = vmul.f32 %v37, %v43
    %vm46 = vcmp.lt.s32.totalorder %v36, 32
    %v47 = vsel %vm46, 1, 0
    %vm48 = vcmp.eq.s32.totalorder %v47, 1
    %v49 = vsel %vm48, %v45, 0.0
    %v50 = vld [vmem:[#allocation2] sm:$0xff]
    %v51 = vadd.f32 %v50, %v49
    %52 = vst [vmem:[#allocation2] sm:$0xff] %v51
    // Predicated region
    $region22: #{tpu_custom_call.1} parent=1 // pred_check
      %p53 = pneg %p27
    $region23: #{tpu_custom_call.1} parent=1 // pred_check_branch
      %55 = sbr.rel (%p53) target = $region25
    $region24: #{tpu_custom_call.1} parent=1 // pred_region
      %v56 = vld [vmem:[#allocation2] sm:$0xff]
      %57 = vadd.xlane.f32.xlu0 %v56
      %v58 = vpop.xlane.xlu0 %57
      %s59 = sld [smem:[#allocation3]]
      %v60 = vstv %s59
      %v61 = vadd.f32 %v58, %v60
      %vm62 = vcmask 7168
      %63 = vst.msk [vmem:[%s3] sm:$0xff] %vm62, %v61
    $region25: #{tpu_custom_call.1} parent=1 // pred_fallthru
      _
    // Predicated region
    $region26: #{tpu_custom_call.1} parent=1 // pred_check
      _
    $region27: #{tpu_custom_call.1} parent=1 // pred_check_branch
      %65 = sbr.rel (0) target = $region29
    $region28: #{tpu_custom_call.1} parent=1 // pred_region
      _
    $region29: #{tpu_custom_call.1} parent=1 // pred_fallthru
      _
    // Predicated region
    $region30: #{tpu_custom_call.1} parent=1 // pred_check
      _
    $region31: #{tpu_custom_call.1} parent=1 // pred_check_branch
      %67 = sbr.rel (0) target = $region33
    $region32: #{tpu_custom_call.1} parent=1 // pred_region
      _
    $region33: #{tpu_custom_call.1} parent=1 // pred_fallthru
      _
    %68 = vsyncpa [#allocation5], 1

</llo_original>
